<compile_context>
chip_gen: v6e
topology: v6e:2x2x1
jax: 0.10.0
libtpu: 0.0.40
codegen_flags: <defaults>
</compile_context>

<pallas_src>
import math

import jax
import jax.numpy as jnp
from jax import lax
from jax.experimental import pallas as pl
from jax.experimental.pallas import tpu as pltpu


def _token_embedding_kernel(t_ref, w_ref, b_ref, o_ref):
    # t_ref: (tile_R, k+2)  w_ref: (k+2, C)  b_ref: (1, C)  o_ref: (tile_R, C)
    acc = jnp.dot(t_ref[...], w_ref[...], preferred_element_type=jnp.float32)
    o_ref[...] = (acc + b_ref[...]).astype(o_ref.dtype)


def _round_up(x, m):
    return -(-x // m) * m


def _pick_tile_rows(n_rows, out_row_bytes, in_row_bytes,
                    target_out_bytes=8 << 20, vmem_budget_bytes=40 << 20):
    """Row-tile size: full extent if it fits, else a multiple of 8 sized so the
    output block is ~target_out_bytes and double-buffered in+out blocks stay
    inside the VMEM budget.  Tail blocks are handled by pl.cdiv + masking."""
    per_row_vmem = 2 * (out_row_bytes + in_row_bytes)      # double-buffered
    if (n_rows * out_row_bytes <= target_out_bytes
            and n_rows * per_row_vmem <= vmem_budget_bytes):
        return n_rows                                      # one block, full extent
    cap = min(target_out_bytes // out_row_bytes,
              vmem_budget_bytes // per_row_vmem)
    return max(8, (int(cap) // 8) * 8)


def token_embedding(x, conv_weight, conv_bias):
    """x: (B, L, 1) f32; conv_weight: (d_model, 1, 3) (PyTorch OIW); conv_bias: (d_model,)."""
    B, L, _ = x.shape
    d_model = conv_weight.shape[0]
    dtype = x.dtype
    itemsize = jnp.dtype(dtype).itemsize

    # Lane-dense fold: k positions per output row so C = k*d_model is always a
    # multiple of 128 (never emits masked partial stores).
    k = 128 // math.gcd(d_model, 128)
    C = k * d_model
    R = -(-L // k)                 # folded rows per batch (row-pad if L % k != 0)
    L_pad = R * k
    N = B * R                      # flattened row extent (B folded into rows)

    # ---- wrapper-side prep (cheap, fuses into surrounding XLA graph) -------
    x_flat = x[..., 0]                                             # (B, L)
    # Circularly extended sequence: x_ext[:, p] = x[:, (p-1) % L]; trailing pad
    # rows only feed outputs that get sliced off, so zeros are fine there.
    x_ext = jnp.concatenate([x_flat[:, -1:], x_flat, x_flat[:, :1]], axis=1)
    if L_pad > L:
        x_ext = jnp.pad(x_ext, ((0, 0), (0, L_pad - L)))
    # Halo'd taps: folded row j needs x_ext[:, j*k : j*k + k + 2].
    idx = jnp.arange(R)[:, None] * k + jnp.arange(k + 2)[None, :]  # (R, k+2)
    taps = jnp.take(x_ext, idx, axis=1).reshape(N, k + 2)          # (N, k+2)

    # Banded, block-folded weights: W[c, s*d_model + m] = w_taps[c - s, m] for
    # c - s in {0,1,2}; taps @ W computes the circular conv of all k folded
    # positions at once.  Bias is folded per position and added in-kernel.
    w_taps = jnp.transpose(conv_weight[:, 0, :]).astype(dtype)     # (3, d_model)
    W = jnp.zeros((k + 2, k, d_model), dtype=dtype)
    for s in range(k):                                             # k is static
        W = W.at[s:s + 3, s, :].set(w_taps)
    W = W.reshape(k + 2, C)
    bias_f = jnp.tile(conv_bias.astype(dtype), (k,)).reshape(1, C)

    # ---- tiling / VMEM budget -----------------------------------------------
    out_row_bytes = C * itemsize
    in_row_bytes = _round_up(k + 2, 128) * itemsize     # lane-padded VMEM cost
    fixed_vmem = 2 * (_round_up(k + 2, 8) + 8) * C * itemsize      # W + bias
    budget = max((40 << 20) - fixed_vmem, 4 << 20)
    tile_R = _pick_tile_rows(N, out_row_bytes, in_row_bytes,
                             target_out_bytes=8 << 20, vmem_budget_bytes=budget)
    grid = (pl.cdiv(N, tile_R),)

    flops = 2 * N * (k + 2) * C
    bytes_accessed = (N * (k + 2) + N * C + (k + 2) * C + C) * itemsize

    out_folded = pl.pallas_call(
        _token_embedding_kernel,
        out_shape=jax.ShapeDtypeStruct((N, C), dtype),
        grid=grid,
        in_specs=[
            pl.BlockSpec((tile_R, k + 2), lambda i: (i, 0)),
            pl.BlockSpec((k + 2, C), lambda i: (0, 0)),
            pl.BlockSpec((1, C), lambda i: (0, 0)),
        ],
        out_specs=pl.BlockSpec((tile_R, C), lambda i: (i, 0)),
        compiler_params=pltpu.CompilerParams(
            dimension_semantics=("parallel",),
            vmem_limit_bytes=48 * 1024 * 1024,
        ),
        cost_estimate=pl.CostEstimate(
            flops=flops, transcendentals=0, bytes_accessed=bytes_accessed),
    )(taps, W, bias_f)

    # Free (row-major contiguous) un-fold back to the logical layout.
    out = out_folded.reshape(B, L_pad, d_model)
    if L_pad > L:
        out = out[:, :L, :]
    return out


if __name__ == "__main__":
    B, L, d_model = 2, 8, 32
    D_INP = 1

    key = jax.random.PRNGKey(0)
    k1, k2, k3 = jax.random.split(key, 3)
    x = jax.random.normal(k1, (B, L, D_INP), dtype=jnp.float32)

    # Deterministic init matching nn.Conv1d's default (kaiming-uniform with
    # a=sqrt(5) -> bound = 1/sqrt(fan_in), fan_in = in_channels * kernel_size).
    fan_in = D_INP * 3
    bound = 1.0 / (fan_in ** 0.5)
    conv_weight = jax.random.uniform(k2, (d_model, D_INP, 3), dtype=jnp.float32,
                                     minval=-bound, maxval=bound)
    conv_bias = jax.random.uniform(k3, (d_model,), dtype=jnp.float32,
                                   minval=-bound, maxval=bound)

    out = jax.block_until_ready(token_embedding(x, conv_weight, conv_bias))

    # Independent reference: explicit circular pad + VALID cross-correlation,
    # mirroring nn.Conv1d(padding=1, padding_mode='circular').
    x_ncw = jnp.transpose(x, (0, 2, 1))                        # (B, 1, L)
    x_pad = jnp.pad(x_ncw, ((0, 0), (0, 0), (1, 1)), mode="wrap")
    y = lax.conv_general_dilated(x_pad, conv_weight, window_strides=(1,),
                                 padding="VALID",
                                 dimension_numbers=("NCH", "OIH", "NCH"))
    y = y + conv_bias[None, :, None]
    expected = jnp.transpose(y, (0, 2, 1))                     # (B, L, d_model)

    assert out.shape == (B, L, d_model)
    assert out.dtype == expected.dtype
    assert jnp.allclose(out, expected, rtol=1e-5, atol=1e-5)
    print("KERNEL_OK")
</pallas_src>

<mosaic_0001>
module attributes {stable_mosaic.version = 11 : i64} {
  func.func @_token_embedding_kernel(%arg0: i32, %arg1: memref<4x6xf32, #tpu.memory_space<vmem>>, %arg2: memref<6x128xf32, #tpu.memory_space<vmem>>, %arg3: memref<1x128xf32, #tpu.memory_space<vmem>>, %arg4: memref<4x128xf32, #tpu.memory_space<vmem>>) attributes {dimension_semantics = [#tpu.dimension_semantics<parallel>], iteration_bounds = array<i64: 1>, scalar_prefetch = 0 : i64, scratch_operands = 0 : i64, tpu.core_type = #tpu.core_type<tc>, window_params = [{transform_indices = @transform_0, window_bounds = array<i64: 4, 6>}, {pipeline_mode = #tpu.pipeline_mode<synchronous>, transform_indices = @transform_1, window_bounds = array<i64: 6, 128>}, {pipeline_mode = #tpu.pipeline_mode<synchronous>, transform_indices = @transform_2, window_bounds = array<i64: 1, 128>}, {transform_indices = @transform_3, window_bounds = array<i64: 4, 128>}]} {
    %c0 = arith.constant 0 : index
    %c0_0 = arith.constant 0 : index
    %0 = vector.load %arg1[%c0, %c0_0] : memref<4x6xf32, #tpu.memory_space<vmem>>, vector<4x6xf32>
    %c0_1 = arith.constant 0 : index
    %c0_2 = arith.constant 0 : index
    %1 = vector.load %arg2[%c0_1, %c0_2] : memref<6x128xf32, #tpu.memory_space<vmem>>, vector<6x128xf32>
    %cst = arith.constant dense<0.000000e+00> : vector<4x128xf32>
    %2 = tpu.matmul %0, %1, %cst {dimension_numbers = #tpu.dot_dimension_numbers<[1], [0], [0], [1], [0, 0, 1, 1], [], []>} : vector<4x6xf32>, vector<6x128xf32>, vector<4x128xf32> -> vector<4x128xf32>
    %c0_3 = arith.constant 0 : index
    %c0_4 = arith.constant 0 : index
    %3 = vector.load %arg3[%c0_3, %c0_4] : memref<1x128xf32, #tpu.memory_space<vmem>>, vector<1x128xf32>
    %4 = vector.broadcast %3 : vector<1x128xf32> to vector<4x128xf32>
    %5 = arith.addf %2, %4 : vector<4x128xf32>
    %c0_5 = arith.constant 0 : index
    %c0_6 = arith.constant 0 : index
    %6 = vector.load %arg4[%c0_5, %c0_6] : memref<4x128xf32, #tpu.memory_space<vmem>>, vector<4x128xf32>
    tpu.vector_store %arg4[%c0_5, %c0_6], %5 {strides = array<i32>} : memref<4x128xf32, #tpu.memory_space<vmem>>, vector<4x128xf32>,
    return
  }
  func.func @transform_0(%arg0: i32) -> (i32, i32) {
    %c0_i32 = arith.constant 0 : i32
    %c0_i32_0 = arith.constant 0 : i32
    return %arg0, %c0_i32 : i32, i32
  }
  func.func @transform_1(%arg0: i32) -> (i32, i32) {
    %c0_i32 = arith.constant 0 : i32
    %c0_i32_0 = arith.constant 0 : i32
    %c0_i32_1 = arith.constant 0 : i32
    return %c0_i32, %c0_i32_0 : i32, i32
  }
  func.func @transform_2(%arg0: i32) -> (i32, i32) {
    %c0_i32 = arith.constant 0 : i32
    %c0_i32_0 = arith.constant 0 : i32
    %c0_i32_1 = arith.constant 0 : i32
    return %c0_i32, %c0_i32_0 : i32, i32
  }
  func.func @transform_3(%arg0: i32) -> (i32, i32) {
    %c0_i32 = arith.constant 0 : i32
    %c0_i32_0 = arith.constant 0 : i32
    return %arg0, %c0_i32 : i32, i32
  }
}

</mosaic_0001>

<llo_original>
// kernel: tpu_custom_call.1
$region0: #{tpu_custom_call.1}
  #allocation0 [shape = 'u32[]', space=smem, size = 0x4, offset = 0x4, fixed_abs, tag = 'smem constant byte address 0x4 - core index']
  #allocation1 [shape = 'u32[144,128]{1,0:T(1,128)}', space=vmem, size = 0x12000, scoped, tag = 'internal scratch']
  %s0 = inlined_call_operand.hbm [shape: f32[4,6], index: 0, kind: input, shape index: {}]
  %s1 = inlined_call_operand.hbm [shape: f32[6,128], index: 1, kind: input, shape index: {}]
  %s2 = inlined_call_operand.vmem [shape: f32[1,128], index: 2, kind: input, shape index: {}]
  %s3 = inlined_call_operand.hbm [shape: f32[4,128], index: 3, kind: output, shape index: {}]
  %s4 = sld [smem:[#allocation0]]
  $region30: #{tpu_custom_call.1} parent=0
    _
  %s6 = ssub.s32 1, %s4
  %s7 = scalar_select 0, %s6, %s4
  $region1: #{tpu_custom_call.1} parent=0
    #allocation2 [shape = 'u8[2048]{0}', space=vmem, size = 0x800, scoped, tag = 'input window, operand 0, single buffered']
    #allocation3 [shape = 's32[1]{0}', space=sflag, size = 0x4, scoped, tag = 'scoped memory for tpu_custom_call.1']
    #allocation4 [shape = 's32[1]{0}', space=sflag, size = 0x4, scoped, tag = 'scoped memory for tpu_custom_call.1']
    #allocation5 [shape = 'u8[4096]{0}', space=vmem, size = 0x1000, scoped, tag = 'input window, operand 1, single buffered']
    #allocation6 [shape = 's32[1]{0}', space=sflag, size = 0x4, scoped, tag = 'scoped memory for tpu_custom_call.1']
    #allocation7 [shape = 'u8[2048]{0}', space=vmem, size = 0x800, scoped, tag = 'output window, operand 0, single buffered']
    %8 = vsyncpa [#allocation3], 0
    %9 = vsyncpa [#allocation6], 0
    %10 = vsyncpa [#allocation4], 0
    // Predicated region
    $region2: #{tpu_custom_call.1} parent=1 // pred_check
      _
    $region3: #{tpu_custom_call.1} parent=1 // pred_check_branch
      %12 = sbr.rel (0) target = $region5
    $region4: #{tpu_custom_call.1} parent=1 // pred_region
      %s14 = ssub.s32 64, 64
      %15 = vsyncadd [#allocation3], %s14
      %s17 = sshll.u32 [#allocation2], 4
      %s18 = int_to_ptr.vmem [resolvable:$true] %s17
      %20 = dma.hbm_to_vmem [thread:$0]  %s0, 64, %s18, [#allocation3]
    $region5: #{tpu_custom_call.1} parent=1 // pred_fallthru
      _
    // Predicated region
    $region6: #{tpu_custom_call.1} parent=1 // pred_check
      _
    $region7: #{tpu_custom_call.1} parent=1 // pred_check_branch
      %22 = sbr.rel (0) target = $region9
    $region8: #{tpu_custom_call.1} parent=1 // pred_region
      %s24 = ssub.s32 128, 128
      %25 = vsyncadd [#allocation6], %s24
      %s27 = sshll.u32 [#allocation5], 4
      %s28 = int_to_ptr.vmem [resolvable:$true] %s27
      %30 = dma.hbm_to_vmem [thread:$0]  %s1, 128, %s28, [#allocation6]
    $region9: #{tpu_custom_call.1} parent=1 // pred_fallthru
      _
    // Predicated region
    $region10: #{tpu_custom_call.1} parent=1 // pred_check
      _
    $region11: #{tpu_custom_call.1} parent=1 // pred_check_branch
      %32 = sbr.rel (0) target = $region13
    $region12: #{tpu_custom_call.1} parent=1 // pred_region
      _
    $region13: #{tpu_custom_call.1} parent=1 // pred_fallthru
      _
    // Predicated region
    $region14: #{tpu_custom_call.1} parent=1 // pred_check
      _
    $region15: #{tpu_custom_call.1} parent=1 // pred_check_branch
      %34 = sbr.rel (0) target = $region17
    $region16: #{tpu_custom_call.1} parent=1 // pred_region
      %35 = dma.done [#allocation3], 64
    $region17: #{tpu_custom_call.1} parent=1 // pred_fallthru
      _
    // Predicated region
    $region18: #{tpu_custom_call.1} parent=1 // pred_check
      _
    $region19: #{tpu_custom_call.1} parent=1 // pred_check_branch
      %37 = sbr.rel (0) target = $region21
    $region20: #{tpu_custom_call.1} parent=1 // pred_region
      %38 = dma.done [#allocation6], 128
    $region21: #{tpu_custom_call.1} parent=1 // pred_fallthru
      _
    %v39 = vld [vmem:[#allocation2] sm:$0xf]
    %v40 = vld [vmem:[#allocation5] sm:$0x3f]
    %v41 = vld [vmem:[%s2] sm:$0x1]
    %v43 = vlaneseq
    %v44 = vshrl.u32 %v43, 7
    %v45 = vsub.s32 0, %v44
    %v46 = vrot.slane %v41, %v45
    %vm48 = vcmask 48128
    %v50 = vsel %vm48, %v39, 0
    %vm52 = vcmask 1045504
    %v54 = vsel %vm52, %v40, 0
    %56 = vmatprep.subr.mxu0 0.0
    %57 = vmatpush1.msra.mxu0 0.0
    %58 = vmatprep.subr.mxu0 0.0
    %59 = vmatpush1.msra.mxu0 0.0
    %60 = vmatprep.subr.mxu0 0.0
    %61 = vmatpush1.msra.mxu0 0.0
    %62 = vmatprep.subr.mxu0 0.0
    %63 = vmatpush1.msra.mxu0 0.0
    %64 = vmatprep.subr.mxu0 0.0
    %65 = vmatpush1.msra.mxu0 0.0
    %66 = vmatprep.subr.mxu0 0.0
    %67 = vmatpush1.msra.mxu0 0.0
    %68 = vmatprep.subr.mxu0 0.0
    %69 = vmatpush1.msra.mxu0 0.0
    %70 = vmatprep.subr.mxu0 0.0
    %71 = vmatpush1.msra.mxu0 0.0
    %72 = vmatprep.subr.mxu0 0.0
    %73 = vmatpush1.msra.mxu0 0.0
    %74 = vmatprep.subr.mxu0 0.0
    %75 = vmatpush1.msra.mxu0 0.0
    %76 = vmatprep.subr.mxu0 0.0
    %77 = vmatpush1.msra.mxu0 0.0
    %78 = vmatprep.subr.mxu0 0.0
    %79 = vmatpush1.msra.mxu0 0.0
    %80 = vmatprep.subr.mxu0 0.0
    %81 = vmatpush1.msra.mxu0 0.0
    %82 = vmatprep.subr.mxu0 0.0
    %83 = vmatpush1.msra.mxu0 0.0
    %84 = vmatprep.subr.mxu0 0.0
    %85 = vmatpush1.msra.mxu0 0.0
    %86 = vmatprep.subr.mxu0 0.0
    %87 = vmatpush1.msra.mxu0 %v54
    %88 = vmatprep.subr.mxu0 0.0
    %89 = vmatpush2.msra.mxu0 0.0
    %90 = vmatprep.subr.mxu0 0.0
    %91 = vmatpush2.msra.mxu0 0.0
    %92 = vmatprep.subr.mxu0 0.0
    %93 = vmatpush2.msra.mxu0 0.0
    %94 = vmatprep.subr.mxu0 0.0
    %95 = vmatpush2.msra.mxu0 0.0
    %96 = vmatprep.subr.mxu0 0.0
    %97 = vmatpush2.msra.mxu0 0.0
    %98 = vmatprep.subr.mxu0 0.0
    %99 = vmatpush2.msra.mxu0 0.0
    %100 = vmatprep.subr.mxu0 0.0
    %101 = vmatpush2.msra.mxu0 0.0
    %102 = vmatprep.subr.mxu0 0.0
    %103 = vmatpush2.msra.mxu0 0.0
    %104 = vmatprep.subr.mxu0 0.0
    %105 = vmatpush2.msra.mxu0 0.0
    %106 = vmatprep.subr.mxu0 0.0
    %107 = vmatpush2.msra.mxu0 0.0
    %108 = vmatprep.subr.mxu0 0.0
    %109 = vmatpush2.msra.mxu0 0.0
    %110 = vmatprep.subr.mxu0 0.0
    %111 = vmatpush2.msra.mxu0 0.0
    %112 = vmatprep.subr.mxu0 0.0
    %113 = vmatpush2.msra.mxu0 0.0
    %114 = vmatprep.subr.mxu0 0.0
    %115 = vmatpush2.msra.mxu0 0.0
    %116 = vmatprep.subr.mxu0 0.0
    %117 = vmatpush2.msra.mxu0 0.0
    %118 = vmatprep.subr.mxu0 0.0
    %119 = vmatpush2.msra.mxu0 0.0
    %120 = vmatprep.mubr.f32.mxu0 0.0
    %121 = vmatmul.mubr.f32.gmra.mxu0 %v50
    %v122 = vpop.f32.mrf.mxu0
    %v123 = vadd.f32 %v46, %v122
    %v124 = vpop.f32.mrf.mxu0
    %125 = vdwg.mxu0
    %126 = vst [vmem:[#allocation7] sm:$0xf] %v123
    // Predicated region
    $region22: #{tpu_custom_call.1} parent=1 // pred_check
      _
    $region23: #{tpu_custom_call.1} parent=1 // pred_check_branch
      %128 = sbr.rel (0) target = $region25
    $region24: #{tpu_custom_call.1} parent=1 // pred_region
      %s130 = ssub.s32 64, 64
      %131 = vsyncadd [#allocation4], %s130
      %s133 = sshll.u32 [#allocation7], 4
      %s134 = int_to_ptr.vmem [resolvable:$true] %s133
      %136 = dma.vmem_to_hbm [thread:$0]  %s134, 64, %s3, [#allocation4]
    $region25: #{tpu_custom_call.1} parent=1 // pred_fallthru
      _
    // Predicated region
    $region26: #{tpu_custom_call.1} parent=1 // pred_check
      _
    $region27: #{tpu_custom_call.1} parent=1 // pred_check_branch
      %138 = sbr.rel (0) target = $region29
    $region28: #{tpu_custom_call.1} parent=1 // pred_region
      %139 = dma.done [#allocation4], 64
    $region29: #{tpu_custom_call.1} parent=1 // pred_fallthru
      _
    %140 = vsyncpa [#allocation3], 1
    %141 = vsyncpa [#allocation6], 1
    %142 = vsyncpa [#allocation4], 1

</llo_original>
